<compile_context>
chip_gen: v7x
topology: tpu7x:2x2x1
jax: 0.10.0
libtpu: 0.0.40
codegen_flags: <defaults>
</compile_context>

<pallas_src>
import jax
import jax.numpy as jnp
from jax.experimental import pallas as pl
from jax.experimental.pallas import tpu as pltpu

MINUTE_SIZE = 4
HOUR_SIZE = 24
WEEKDAY_SIZE = 7
DAY_SIZE = 32
MONTH_SIZE = 13

# Feature order along the last input axis (PyTorch convention):
#   inputs[:, :, 0]=month, 1=day, 2=weekday, 3=hour, 4=minute
_FEATURE_SIZES = (MONTH_SIZE, DAY_SIZE, WEEKDAY_SIZE, HOUR_SIZE, MINUTE_SIZE)
_FEATURE_OFFSETS = (
    0,
    MONTH_SIZE,
    MONTH_SIZE + DAY_SIZE,
    MONTH_SIZE + DAY_SIZE + WEEKDAY_SIZE,
    MONTH_SIZE + DAY_SIZE + WEEKDAY_SIZE + HOUR_SIZE,
)
_TOTAL_ROWS = sum(_FEATURE_SIZES)          # 80
_FUSED_ROWS = 128                          # padded fused-table depth (MXU K)


def fuse_tables(params):
    """Build the fused (128, d_model) table once at init (not per forward)."""
    fused = jnp.concatenate(
        [params["month"], params["day"], params["weekday"],
         params["hour"], params["minute"]], axis=0).astype(jnp.float32)
    return jnp.pad(fused, ((0, _FUSED_ROWS - _TOTAL_ROWS), (0, 0)))


def _make_kernel(tile_rows, sub_rows, n_features):
    n_sub = tile_rows // sub_rows

    def kernel(idx_ref, tbl_ref, out_ref):
        # idx_ref: (tile_rows, 5) int32, already offset into fused row space.
        # tbl_ref: (128, d_model) f32 fused table (zero-padded rows).
        tbl = tbl_ref[...]
        k = tbl.shape[0]
        # Hoisted once (JAX does not CSE broadcast_in_dim inside loops).
        iota = jax.lax.broadcasted_iota(jnp.int32, (sub_rows, k), 1)

        def compute_chunk(idx):
            # 2-D one-hot: 5 broadcast compares OR'd together. Row ranges are
            # disjoint so OR == multi-hot with exactly 5 ones per valid row.
            hot = idx[:, 0:1] == iota
            for f in range(1, n_features):
                hot = jnp.logical_or(hot, idx[:, f:f + 1] == iota)
            mh = hot.astype(jnp.float32)
            # Single K=128 MXU matmul; the per-feature sum is fused into the
            # accumulation.
            return jnp.dot(mh, tbl, preferred_element_type=jnp.float32)

        if n_sub == 1:
            out_ref[...] = compute_chunk(idx_ref[...]).astype(out_ref.dtype)
        else:
            def body(c, carry):
                r0 = pl.multiple_of(c * sub_rows, sub_rows)
                idx = idx_ref[pl.ds(r0, sub_rows), :]
                out_ref[pl.ds(r0, sub_rows), :] = (
                    compute_chunk(idx).astype(out_ref.dtype))
                return carry

            # Short, fixed trip count: unroll for LLO scheduler visibility.
            jax.lax.fori_loop(0, n_sub, body, None, unroll=True)

    return kernel


def temporal_embedding(inputs, fused_table, *, tile_rows=2048, sub_rows=256):
    """inputs: (B, L, 5) integer array. fused_table: (128, d_model) f32."""
    B, L, F = inputs.shape
    assert F == len(_FEATURE_SIZES)
    k_rows, d_model = fused_table.shape
    assert k_rows == _FUSED_ROWS

    N = B * L

    # Clamp ids so out-of-range values cannot alias into another feature's
    # fused row range, then offset into fused row space.
    sizes = jnp.asarray(_FEATURE_SIZES, jnp.int32)
    offsets = jnp.asarray(_FEATURE_OFFSETS, jnp.int32)
    idx = inputs.astype(jnp.int32).reshape(N, F)
    idx = jnp.clip(idx, 0, sizes[None, :] - 1) + offsets[None, :]

    # Row tile: large enough to amortize per-step overhead; NO padding of N —
    # the boundary block is masked by Pallas, so the reshape below is a view.
    tile_rows = min(tile_rows, N)
    if tile_rows < N and tile_rows % 8 != 0:
        tile_rows = max(8, (tile_rows // 8) * 8)   # (8,128) sublane rule
    if tile_rows % sub_rows != 0:
        sub_rows = tile_rows                        # small tile: single chunk

    grid = (pl.cdiv(N, tile_rows),)

    # VMEM budget: double-buffered idx/out tiles (last dims lane-padded in
    # VMEM), double-buffered table, one-hot + sub-chunk temps, plus slack for
    # Mosaic internal scratch. Capped below v7x's 64 MiB physical VMEM.
    dp_vmem = ((d_model + 127) // 128) * 128
    vmem_need = (2 * tile_rows * 128 * 4            # idx tiles (lane-padded)
                 + 2 * tile_rows * dp_vmem * 4      # output tiles
                 + 2 * _FUSED_ROWS * dp_vmem * 4    # fused table
                 + 2 * sub_rows * (128 + dp_vmem) * 4  # one-hot + chunk temps
                 + (2 << 20))                       # slack
    vmem_limit = int(min(56 << 20, max(int(vmem_need * 1.5), 16 << 20)))

    kernel = _make_kernel(tile_rows, sub_rows, F)

    out = pl.pallas_call(
        kernel,
        out_shape=jax.ShapeDtypeStruct((N, d_model), jnp.float32),
        grid_spec=pltpu.PrefetchScalarGridSpec(
            num_scalar_prefetch=0,
            grid=grid,
            in_specs=[
                pl.BlockSpec((tile_rows, F), lambda i: (i, 0)),
                pl.BlockSpec((_FUSED_ROWS, d_model), lambda i: (0, 0)),
            ],
            out_specs=pl.BlockSpec((tile_rows, d_model), lambda i: (i, 0)),
        ),
        compiler_params=pltpu.CompilerParams(
            # TODO(synk): profile on v7x to confirm a single "parallel" axis
            # shards rows across both TensorCores; if not, add a leading
            # CORE_PARALLEL grid axis.
            dimension_semantics=("parallel",),
            vmem_limit_bytes=vmem_limit,
        ),
    )(idx, fused_table)

    return out.reshape(B, L, d_model)   # pure view: N and d_model unchanged


def init_params(key, d_model):
    """Deterministic stand-in for nn.Embedding weights (N(0,1) like PyTorch)."""
    ks = jax.random.split(key, 5)
    return {
        "minute":  jax.random.normal(ks[0], (MINUTE_SIZE, d_model), jnp.float32),
        "hour":    jax.random.normal(ks[1], (HOUR_SIZE, d_model), jnp.float32),
        "weekday": jax.random.normal(ks[2], (WEEKDAY_SIZE, d_model), jnp.float32),
        "day":     jax.random.normal(ks[3], (DAY_SIZE, d_model), jnp.float32),
        "month":   jax.random.normal(ks[4], (MONTH_SIZE, d_model), jnp.float32),
    }


def reference(inputs, params):
    idx = inputs.astype(jnp.int32)
    return (params["minute"][idx[:, :, 4]]
            + params["hour"][idx[:, :, 3]]
            + params["weekday"][idx[:, :, 2]]
            + params["day"][idx[:, :, 1]]
            + params["month"][idx[:, :, 0]])


if __name__ == "__main__":
    B, L, d_model = 2, 8, 32
    key = jax.random.PRNGKey(0)
    k_param, k_mon, k_day, k_wd, k_hr, k_min = jax.random.split(key, 6)

    params = init_params(k_param, d_model)
    fused = fuse_tables(params)          # built once at init, reused per call

    month = jax.random.randint(k_mon, (B, L), 0, MONTH_SIZE)
    day = jax.random.randint(k_day, (B, L), 0, DAY_SIZE)
    weekday = jax.random.randint(k_wd, (B, L), 0, WEEKDAY_SIZE)
    hour = jax.random.randint(k_hr, (B, L), 0, HOUR_SIZE)
    minute = jax.random.randint(k_min, (B, L), 0, MINUTE_SIZE)
    # feature order along last axis: [month, day, weekday, hour, minute]
    inputs = jnp.stack([month, day, weekday, hour, minute], axis=-1)

    out = temporal_embedding(inputs, fused)
    out = jax.block_until_ready(out)

    ref = reference(inputs, params)
    assert out.shape == (B, L, d_model)
    assert jnp.allclose(out, ref, atol=1e-5, rtol=1e-5)
    print("KERNEL_OK")
</pallas_src>

<mosaic_0001>
module attributes {stable_mosaic.version = 11 : i64} {
  func.func @kernel(%arg0: i32, %arg1: memref<16x5xi32, #tpu.memory_space<vmem>>, %arg2: memref<128x32xf32, #tpu.memory_space<vmem>>, %arg3: memref<16x32xf32, #tpu.memory_space<vmem>>) attributes {dimension_semantics = [#tpu.dimension_semantics<parallel>], iteration_bounds = array<i64: 1>, scalar_prefetch = 0 : i64, scratch_operands = 0 : i64, tpu.core_type = #tpu.core_type<tc>, window_params = [{transform_indices = @transform_0, window_bounds = array<i64: 16, 5>}, {pipeline_mode = #tpu.pipeline_mode<synchronous>, transform_indices = @transform_1, window_bounds = array<i64: 128, 32>}, {transform_indices = @transform_2, window_bounds = array<i64: 16, 32>}]} {
    %c0 = arith.constant 0 : index
    %c0_0 = arith.constant 0 : index
    %0 = vector.load %arg2[%c0, %c0_0] : memref<128x32xf32, #tpu.memory_space<vmem>>, vector<128x32xf32>
    %1 = tpu.iota {dimensions = array<i32: 1>} : vector<16x128xi32>
    %c0_1 = arith.constant 0 : index
    %c0_2 = arith.constant 0 : index
    %2 = vector.load %arg1[%c0_1, %c0_2] : memref<16x5xi32, #tpu.memory_space<vmem>>, vector<16x5xi32>
    %3 = vector.extract_strided_slice %2 {offsets = [0, 0], sizes = [16, 1], strides = [1, 1]} : vector<16x5xi32> to vector<16x1xi32>
    %4 = vector.broadcast %3 : vector<16x1xi32> to vector<16x128xi32>
    %5 = arith.cmpi eq, %4, %1 : vector<16x128xi32>
    %6 = vector.extract_strided_slice %2 {offsets = [0, 1], sizes = [16, 1], strides = [1, 1]} : vector<16x5xi32> to vector<16x1xi32>
    %7 = vector.broadcast %6 : vector<16x1xi32> to vector<16x128xi32>
    %8 = arith.cmpi eq, %7, %1 : vector<16x128xi32>
    %9 = arith.ori %5, %8 : vector<16x128xi1>
    %10 = vector.extract_strided_slice %2 {offsets = [0, 2], sizes = [16, 1], strides = [1, 1]} : vector<16x5xi32> to vector<16x1xi32>
    %11 = vector.broadcast %10 : vector<16x1xi32> to vector<16x128xi32>
    %12 = arith.cmpi eq, %11, %1 : vector<16x128xi32>
    %13 = arith.ori %9, %12 : vector<16x128xi1>
    %14 = vector.extract_strided_slice %2 {offsets = [0, 3], sizes = [16, 1], strides = [1, 1]} : vector<16x5xi32> to vector<16x1xi32>
    %15 = vector.broadcast %14 : vector<16x1xi32> to vector<16x128xi32>
    %16 = arith.cmpi eq, %15, %1 : vector<16x128xi32>
    %17 = arith.ori %13, %16 : vector<16x128xi1>
    %18 = vector.extract_strided_slice %2 {offsets = [0, 4], sizes = [16, 1], strides = [1, 1]} : vector<16x5xi32> to vector<16x1xi32>
    %19 = vector.broadcast %18 : vector<16x1xi32> to vector<16x128xi32>
    %20 = arith.cmpi eq, %19, %1 : vector<16x128xi32>
    %21 = arith.ori %17, %20 : vector<16x128xi1>
    %22 = arith.extui %21 : vector<16x128xi1> to vector<16x128xi32>
    %23 = arith.sitofp %22 : vector<16x128xi32> to vector<16x128xf32>
    %cst = arith.constant dense<0.000000e+00> : vector<16x32xf32>
    %24 = tpu.matmul %23, %0, %cst {dimension_numbers = #tpu.dot_dimension_numbers<[1], [0], [0], [1], [0, 0, 1, 1], [], []>} : vector<16x128xf32>, vector<128x32xf32>, vector<16x32xf32> -> vector<16x32xf32>
    %c0_3 = arith.constant 0 : index
    %c0_4 = arith.constant 0 : index
    %25 = vector.load %arg3[%c0_3, %c0_4] : memref<16x32xf32, #tpu.memory_space<vmem>>, vector<16x32xf32>
    tpu.vector_store %arg3[%c0_3, %c0_4], %24 {strides = array<i32>} : memref<16x32xf32, #tpu.memory_space<vmem>>, vector<16x32xf32>,
    return
  }
  func.func @transform_0(%arg0: i32) -> (i32, i32) {
    %c0_i32 = arith.constant 0 : i32
    %c0_i32_0 = arith.constant 0 : i32
    return %arg0, %c0_i32 : i32, i32
  }
  func.func @transform_1(%arg0: i32) -> (i32, i32) {
    %c0_i32 = arith.constant 0 : i32
    %c0_i32_0 = arith.constant 0 : i32
    %c0_i32_1 = arith.constant 0 : i32
    return %c0_i32, %c0_i32_0 : i32, i32
  }
  func.func @transform_2(%arg0: i32) -> (i32, i32) {
    %c0_i32 = arith.constant 0 : i32
    %c0_i32_0 = arith.constant 0 : i32
    return %arg0, %c0_i32 : i32, i32
  }
}

</mosaic_0001>

<llo_original>
// kernel: tpu_custom_call.1
$region0: #{tpu_custom_call.1}
  #allocation0 [shape = 'u32[]', space=smem, size = 0x4, offset = 0x4, fixed_abs, tag = 'smem constant byte address 0x4 - core index']
  #allocation1 [shape = 'u32[144,128]{1,0:T(1,128)}', space=vmem, size = 0x12000, scoped, tag = 'internal scratch']
  %s0 = inlined_call_operand.vmem [shape: s32[16,5], index: 0, kind: input, shape index: {}]
  %s1 = inlined_call_operand.vmem [shape: f32[128,32], index: 1, kind: input, shape index: {}]
  %s2 = inlined_call_operand.hbm [shape: f32[16,32], index: 2, kind: output, shape index: {}]
  %s3 = sld [smem:[#allocation0]]
  $region18: #{tpu_custom_call.1} parent=0
    _
  %s5 = ssub.s32 1, %s3
  %s6 = scalar_select 0, %s5, %s3
  $region1: #{tpu_custom_call.1} parent=0
    #allocation2 [shape = 'u8[8192]{0}', space=vmem, size = 0x2000, scoped, tag = 'output window, operand 0, single buffered']
    #allocation3 [shape = 's32[1]{0}', space=sflag, size = 0x4, scoped, tag = 'scoped memory for tpu_custom_call.1']
    %7 = vsyncpa [#allocation3], 0
    // Predicated region
    $region2: #{tpu_custom_call.1} parent=1 // pred_check
      _
    $region3: #{tpu_custom_call.1} parent=1 // pred_check_branch
      %9 = sbr.rel (0) target = $region5
    $region4: #{tpu_custom_call.1} parent=1 // pred_region
      _
    $region5: #{tpu_custom_call.1} parent=1 // pred_fallthru
      _
    // Predicated region
    $region6: #{tpu_custom_call.1} parent=1 // pred_check
      _
    $region7: #{tpu_custom_call.1} parent=1 // pred_check_branch
      %11 = sbr.rel (0) target = $region9
    $region8: #{tpu_custom_call.1} parent=1 // pred_region
      _
    $region9: #{tpu_custom_call.1} parent=1 // pred_fallthru
      _
    %v12 = vld [vmem:[%s1] sm:$0xff]
    %v13 = vld [vmem:[%s1 + $0x8] sm:$0xff]
    %v14 = vld [vmem:[%s1 + $0x10] sm:$0xff]
    %v15 = vld [vmem:[%s1 + $0x18] sm:$0xff]
    %v16 = vld [vmem:[%s1 + $0x20] sm:$0xff]
    %v17 = vld [vmem:[%s1 + $0x28] sm:$0xff]
    %v18 = vld [vmem:[%s1 + $0x30] sm:$0xff]
    %v19 = vld [vmem:[%s1 + $0x38] sm:$0xff]
    %v20 = vld [vmem:[%s1 + $0x40] sm:$0xff]
    %v21 = vld [vmem:[%s1 + $0x48] sm:$0xff]
    %v22 = vld [vmem:[%s1 + $0x50] sm:$0xff]
    %v23 = vld [vmem:[%s1 + $0x58] sm:$0xff]
    %v24 = vld [vmem:[%s1 + $0x60] sm:$0xff]
    %v25 = vld [vmem:[%s1 + $0x68] sm:$0xff]
    %v26 = vld [vmem:[%s1 + $0x70] sm:$0xff]
    %v27 = vld [vmem:[%s1 + $0x78] sm:$0xff]
    %v28 = vlaneseq
    %v29 = vand.u32 %v28, 127
    %v30 = vld [vmem:[%s0] sm:$0xff]
    %v31 = vld [vmem:[%s0 + $0x8] sm:$0xff]
    %32 = vset.pattern.permute.xlu0 0
    %33 = vperm.xlu0 %32, %v30
    %v34 = vpop.permute.xlu0 %33
    %35 = vset.pattern.permute.xlu0 0
    %36 = vperm.xlu0 %35, %v31
    %v37 = vpop.permute.xlu0 %36
    %vm38 = vcmp.eq.s32.totalorder %v34, %v29
    %vm39 = vcmp.eq.s32.totalorder %v37, %v29
    %40 = vset.pattern.permute.xlu0 1
    %41 = vperm.xlu0 %40, %v30
    %v42 = vpop.permute.xlu0 %41
    %43 = vset.pattern.permute.xlu0 1
    %44 = vperm.xlu0 %43, %v31
    %v45 = vpop.permute.xlu0 %44
    %vm46 = vcmp.eq.s32.totalorder %v42, %v29
    %vm47 = vcmp.eq.s32.totalorder %v45, %v29
    %vm48 = vmor %vm38, %vm46
    %vm49 = vmor %vm39, %vm47
    %50 = vset.pattern.permute.xlu0 2
    %51 = vperm.xlu0 %50, %v30
    %v52 = vpop.permute.xlu0 %51
    %53 = vset.pattern.permute.xlu0 2
    %54 = vperm.xlu0 %53, %v31
    %v55 = vpop.permute.xlu0 %54
    %vm56 = vcmp.eq.s32.totalorder %v52, %v29
    %vm57 = vcmp.eq.s32.totalorder %v55, %v29
    %vm58 = vmor %vm48, %vm56
    %vm59 = vmor %vm49, %vm57
    %60 = vset.pattern.permute.xlu0 3
    %61 = vperm.xlu0 %60, %v30
    %v62 = vpop.permute.xlu0 %61
    %63 = vset.pattern.permute.xlu0 3
    %64 = vperm.xlu0 %63, %v31
    %v65 = vpop.permute.xlu0 %64
    %vm66 = vcmp.eq.s32.totalorder %v62, %v29
    %vm67 = vcmp.eq.s32.totalorder %v65, %v29
    %vm68 = vmor %vm58, %vm66
    %vm69 = vmor %vm59, %vm67
    %70 = vset.pattern.permute.xlu0 4
    %71 = vperm.xlu0 %70, %v30
    %v72 = vpop.permute.xlu0 %71
    %73 = vset.pattern.permute.xlu0 4
    %74 = vperm.xlu0 %73, %v31
    %v75 = vpop.permute.xlu0 %74
    %vm76 = vcmp.eq.s32.totalorder %v72, %v29
    %vm77 = vcmp.eq.s32.totalorder %v75, %v29
    %vm78 = vmor %vm68, %vm76
    %vm79 = vmor %vm69, %vm77
    %v80 = vsel %vm78, 1, 0
    %v81 = vsel %vm79, 1, 0
    %v82 = vcvt.s32.f32 %v80
    %v83 = vcvt.s32.f32 %v81
    %84 = vmatprep.subr.mxu0 0.0
    %85 = vmatpush1.msra.mxu0 %v12
    %86 = vmatprep.subr.mxu0 0.0
    %87 = vmatpush1.msra.mxu0 %v13
    %88 = vmatprep.subr.mxu0 0.0
    %89 = vmatpush1.msra.mxu0 %v14
    %90 = vmatprep.subr.mxu0 0.0
    %91 = vmatpush1.msra.mxu0 %v15
    %92 = vmatprep.subr.mxu0 0.0
    %93 = vmatpush1.msra.mxu0 %v16
    %94 = vmatprep.subr.mxu0 0.0
    %95 = vmatpush1.msra.mxu0 %v17
    %96 = vmatprep.subr.mxu0 0.0
    %97 = vmatpush1.msra.mxu0 %v18
    %98 = vmatprep.subr.mxu0 0.0
    %99 = vmatpush1.msra.mxu0 %v19
    %100 = vmatprep.subr.mxu0 0.0
    %101 = vmatpush1.msra.mxu0 %v20
    %102 = vmatprep.subr.mxu0 0.0
    %103 = vmatpush1.msra.mxu0 %v21
    %104 = vmatprep.subr.mxu0 0.0
    %105 = vmatpush1.msra.mxu0 %v22
    %106 = vmatprep.subr.mxu0 0.0
    %107 = vmatpush1.msra.mxu0 %v23
    %108 = vmatprep.subr.mxu0 0.0
    %109 = vmatpush1.msra.mxu0 %v24
    %110 = vmatprep.subr.mxu0 0.0
    %111 = vmatpush1.msra.mxu0 %v25
    %112 = vmatprep.subr.mxu0 0.0
    %113 = vmatpush1.msra.mxu0 %v26
    %114 = vmatprep.subr.mxu0 0.0
    %115 = vmatpush1.msra.mxu0 %v27
    %116 = vmatprep.subr.mxu0 0.0
    %117 = vmatpush1.msra.mxu0 0.0
    %118 = vmatprep.subr.mxu0 0.0
    %119 = vmatpush1.msra.mxu0 0.0
    %120 = vmatprep.subr.mxu0 0.0
    %121 = vmatpush1.msra.mxu0 0.0
    %122 = vmatprep.subr.mxu0 0.0
    %123 = vmatpush1.msra.mxu0 0.0
    %124 = vmatprep.subr.mxu0 0.0
    %125 = vmatpush1.msra.mxu0 0.0
    %126 = vmatprep.subr.mxu0 0.0
    %127 = vmatpush1.msra.mxu0 0.0
    %128 = vmatprep.subr.mxu0 0.0
    %129 = vmatpush1.msra.mxu0 0.0
    %130 = vmatprep.subr.mxu0 0.0
    %131 = vmatpush1.msra.mxu0 0.0
    %132 = vmatprep.subr.mxu0 0.0
    %133 = vmatpush1.msra.mxu0 0.0
    %134 = vmatprep.subr.mxu0 0.0
    %135 = vmatpush1.msra.mxu0 0.0
    %136 = vmatprep.subr.mxu0 0.0
    %137 = vmatpush1.msra.mxu0 0.0
    %138 = vmatprep.subr.mxu0 0.0
    %139 = vmatpush1.msra.mxu0 0.0
    %140 = vmatprep.subr.mxu0 0.0
    %141 = vmatpush1.msra.mxu0 0.0
    %142 = vmatprep.subr.mxu0 0.0
    %143 = vmatpush1.msra.mxu0 0.0
    %144 = vmatprep.subr.mxu0 0.0
    %145 = vmatpush1.msra.mxu0 0.0
    %146 = vmatprep.subr.mxu0 0.0
    %147 = vmatpush1.msra.mxu0 0.0
    %148 = vmatprep.mubr.f32.mxu0 0.0
    %149 = vmatmul.mubr.f32.gmra.mrb[0].mxu0 %v82
    %v150 = vpop.f32.mrb[0].mxu0
    %v151 = vadd.f32 0.0, %v150
    %v152 = vpop.f32.mrb[0].mxu0
    %153 = vmatprep.mubr.f32.mxu0 0.0
    %154 = vmatmul.mubr.f32.gmra.mrb[0].mxu0 %v83
    %v155 = vpop.f32.mrb[0].mxu0
    %v156 = vadd.f32 0.0, %v155
    %v157 = vpop.f32.mrb[0].mxu0
    %158 = vdwg.mxu0
    %vm159 = vcmask 261120
    %160 = vst.msk [vmem:[#allocation2] sm:$0xff] %vm159, %v151
    %161 = vst.msk [vmem:[#allocation2 + $0x8] sm:$0xff] %vm159, %v156
    // Predicated region
    $region10: #{tpu_custom_call.1} parent=1 // pred_check
      _
    $region11: #{tpu_custom_call.1} parent=1 // pred_check_branch
      %163 = sbr.rel (0) target = $region13
    $region12: #{tpu_custom_call.1} parent=1 // pred_region
      %s165 = ssub.s32 256, 256
      %166 = vsyncadd [#allocation3], %s165
      %s167 = sshll.u32 [#allocation2], 4
      %s168 = int_to_ptr.vmem [resolvable:$true] %s167
      %173 = dma.vmem_to_hbm [thread:$0]  %s168, 256, %s2, [#allocation3], 128, 128, 8
    $region13: #{tpu_custom_call.1} parent=1 // pred_fallthru
      _
    // Predicated region
    $region14: #{tpu_custom_call.1} parent=1 // pred_check
      _
    $region15: #{tpu_custom_call.1} parent=1 // pred_check_branch
      %175 = sbr.rel (0) target = $region17
    $region16: #{tpu_custom_call.1} parent=1 // pred_region
      %176 = dma.done [#allocation3], 256
    $region17: #{tpu_custom_call.1} parent=1 // pred_fallthru
      _
    %177 = vsyncpa [#allocation3], 1

</llo_original>
